<compile_context>
chip_gen: v6e
topology: v6e:2x2x1
jax: 0.10.0
libtpu: 0.0.40
codegen_flags: <defaults>
</compile_context>

<pallas_src>
import functools

import jax
import jax.numpy as jnp
from jax.experimental import pallas as pl
from jax.experimental.pallas import tpu as pltpu

LANE = 128      # lane width -> fused output is padded to a multiple of this
SUBLANE = 8


def _round_up(x, m):
    return ((x + m - 1) // m) * m


def ppo_kernel(x_ref, w1_ref, w2_ref, w3_ref, b12_ref, b3_ref, out_ref, *,
               action_dim):
    x = x_ref[...]                                   # [Bt, S]
    b12 = b12_ref[...]                               # [2, 2H]
    b1 = b12[0:1, :]
    b2 = b12[1:2, :]

    # Layer 1 (actor & critic fused): [Bt, S] @ [S, 2H]
    y = jnp.dot(x, w1_ref[...], preferred_element_type=jnp.float32) + b1
    y = jnp.maximum(y, 0.0)

    # Layer 2 (block-diagonal [2H, 2H]): actor hidden in cols :H, critic in H:
    y = jnp.dot(y, w2_ref[...], preferred_element_type=jnp.float32) + b2
    y = jnp.maximum(y, 0.0)

    # Layer 3 (block-diagonal + lane-padded [2H, 128]):
    #   cols :A -> actor logits, col A -> critic value, cols A+1: -> zeros.
    z = jnp.dot(y, w3_ref[...], preferred_element_type=jnp.float32) + b3_ref[...]

    # Numerically-stable softmax over the logit columns only; the value column
    # (and lane padding) is passed through untouched.  Non-logit exps are
    # explicitly zeroed (robust even if a logit were hugely negative).
    col = jax.lax.broadcasted_iota(jnp.int32, z.shape, 1)
    is_logit = col < action_dim
    m = jnp.max(jnp.where(is_logit, z, -jnp.inf), axis=-1, keepdims=True)
    e = jnp.where(is_logit, jnp.exp(z - m), 0.0)
    denom = jnp.sum(e, axis=-1, keepdims=True)
    probs = e / denom
    out_ref[...] = jnp.where(is_logit, probs, z)


def pack_params(p):
    """Pack the 12 per-head tensors into 5 fused operands.

    Call ONCE at init and reuse the result for every forward step -- packing is
    deliberately kept out of the per-call path.
    """
    H = p["aw1"].shape[1]
    A = p["aw3"].shape[1]
    out_pad = _round_up(A + 1, LANE)
    f32 = jnp.float32

    w1 = jnp.concatenate([p["aw1"], p["cw1"]], axis=1)                 # [S, 2H]
    w2 = jnp.block([[p["aw2"], jnp.zeros((H, H), f32)],
                    [jnp.zeros((H, H), f32), p["cw2"]]])               # [2H, 2H]
    w3 = jnp.zeros((2 * H, out_pad), f32)
    w3 = w3.at[:H, :A].set(p["aw3"]).at[H:, A:A + 1].set(p["cw3"])     # [2H, 128]
    b12 = jnp.concatenate(
        [jnp.concatenate([p["ab1"], p["cb1"]], axis=1),
         jnp.concatenate([p["ab2"], p["cb2"]], axis=1)], axis=0)       # [2, 2H]
    b3 = jnp.zeros((1, out_pad), f32)
    b3 = b3.at[0, :A].set(p["ab3"][0]).at[0, A:A + 1].set(p["cb3"][0])  # [1, 128]
    return (w1, w2, w3, b12, b3)


def ppo_forward(x, packed, *, action_dim, max_tile=4096, min_grid_batch=1024):
    """x: [B, state_dim] float32.  packed: output of pack_params().

    Returns (probs [B, action_dim], value [B, 1]).
    """
    w1, w2, w3, b12, b3 = packed
    B, S = x.shape
    H2 = w1.shape[1]
    out_pad = w3.shape[1]
    kernel = functools.partial(ppo_kernel, action_dim=action_dim)

    cost = pl.CostEstimate(
        flops=2 * B * (S * H2 + H2 * H2 + H2 * out_pad),
        transcendentals=B * out_pad,
        bytes_accessed=4 * (B * _round_up(S, LANE) + B * out_pad
                            + w1.size + w2.size + w3.size + b12.size + b3.size),
    )

    if B >= min_grid_batch:
        # Grid path: ~2 big parallel steps (megacore split on v7x; minimal
        # per-step overhead on single-TC v5e/v6e), tiles capped at max_tile
        # rows so the live footprint stays well under the default scoped-VMEM
        # limit.  Batch is padded so any B stays on this fast path.
        tile = min(_round_up(pl.cdiv(B, 2), SUBLANE), max_tile)
        Bp = _round_up(B, tile)
        if Bp != B:
            x = jnp.pad(x, ((0, Bp - B), (0, 0)))
        const = lambda i: (0, 0)
        fused = pl.pallas_call(
            kernel,
            out_shape=jax.ShapeDtypeStruct((Bp, out_pad), jnp.float32),
            grid=(Bp // tile,),
            in_specs=[
                pl.BlockSpec((tile, S), lambda i: (i, 0)),
                pl.BlockSpec((S, H2), const),
                pl.BlockSpec((H2, H2), const),
                pl.BlockSpec((H2, out_pad), const),
                pl.BlockSpec((2, H2), const),
                pl.BlockSpec((1, out_pad), const),
            ],
            out_specs=pl.BlockSpec((tile, out_pad), lambda i: (i, 0)),
            compiler_params=pltpu.CompilerParams(
                dimension_semantics=("parallel",)),
            cost_estimate=cost,
        )(x, w1, w2, w3, b12, b3)
    else:
        # Small batch: everything resident in VMEM, no grid.  (For truly tiny
        # B a fused-XLA path can beat the pallas_call launch floor; kept here
        # so the kernel is exercised at rollout-sized batches.)
        Bp = _round_up(max(B, SUBLANE), SUBLANE)
        if Bp != B:
            x = jnp.pad(x, ((0, Bp - B), (0, 0)))
        vmem = pl.BlockSpec(memory_space=pltpu.MemorySpace.VMEM)
        fused = pl.pallas_call(
            kernel,
            out_shape=jax.ShapeDtypeStruct((Bp, out_pad), jnp.float32),
            in_specs=[vmem] * 6,
            out_specs=vmem,
            cost_estimate=cost,
        )(x, w1, w2, w3, b12, b3)

    probs = fused[:B, :action_dim]
    value = fused[:B, action_dim:action_dim + 1]
    return probs, value


def init_params(key, state_dim, action_dim, hidden_dim):
    """Deterministic init mimicking nn.Linear's U(-1/sqrt(fan_in), 1/sqrt(fan_in))."""
    def linear(k, fan_in, fan_out):
        kw, kb = jax.random.split(k)
        bound = 1.0 / jnp.sqrt(jnp.float32(fan_in))
        w = jax.random.uniform(kw, (fan_in, fan_out), jnp.float32, -bound, bound)
        b = jax.random.uniform(kb, (1, fan_out), jnp.float32, -bound, bound)
        return w, b

    keys = jax.random.split(key, 6)
    aw1, ab1 = linear(keys[0], state_dim, hidden_dim)
    aw2, ab2 = linear(keys[1], hidden_dim, hidden_dim)
    aw3, ab3 = linear(keys[2], hidden_dim, action_dim)
    cw1, cb1 = linear(keys[3], state_dim, hidden_dim)
    cw2, cb2 = linear(keys[4], hidden_dim, hidden_dim)
    cw3, cb3 = linear(keys[5], hidden_dim, 1)
    return dict(aw1=aw1, ab1=ab1, aw2=aw2, ab2=ab2, aw3=aw3, ab3=ab3,
                cw1=cw1, cb1=cb1, cw2=cw2, cb2=cb2, cw3=cw3, cb3=cb3)


def reference_forward(x, p):
    relu = lambda v: jnp.maximum(v, 0.0)
    h = relu(x @ p["aw1"] + p["ab1"])
    h = relu(h @ p["aw2"] + p["ab2"])
    logits = h @ p["aw3"] + p["ab3"]
    probs = jax.nn.softmax(logits, axis=-1)
    g = relu(x @ p["cw1"] + p["cb1"])
    g = relu(g @ p["cw2"] + p["cb2"])
    value = g @ p["cw3"] + p["cb3"]
    return probs, value


if __name__ == "__main__":
    state_dim, action_dim, hidden_dim = 16, 8, 32

    key = jax.random.PRNGKey(0)
    kx, kp, kx2 = jax.random.split(key, 3)
    params = init_params(kp, state_dim, action_dim, hidden_dim)

    # Pack ONCE, outside the per-step forward path.
    packed = pack_params(params)
    jax.block_until_ready(packed)

    fwd = jax.jit(functools.partial(ppo_forward, action_dim=action_dim))

    # --- small batch: single resident block, no grid ---
    x = jax.random.normal(kx, (8, state_dim), dtype=jnp.float32)
    probs, value = fwd(x, packed)
    jax.block_until_ready((probs, value))

    ref_probs, ref_value = reference_forward(x, params)
    assert probs.shape == (8, action_dim)
    assert value.shape == (8, 1)
    assert jnp.allclose(probs, ref_probs, atol=1e-5, rtol=1e-5)
    assert jnp.allclose(value, ref_value, atol=1e-5, rtol=1e-5)
    assert jnp.allclose(jnp.sum(probs, axis=-1), 1.0, atol=1e-5)

    # --- larger, non-divisible batch: exercises the padded 2-step parallel grid ---
    B_big = 1050
    xb = jax.random.normal(kx2, (B_big, state_dim), dtype=jnp.float32)
    pb, vb = fwd(xb, packed)
    jax.block_until_ready((pb, vb))

    rpb, rvb = reference_forward(xb, params)
    assert pb.shape == (B_big, action_dim) and vb.shape == (B_big, 1)
    assert jnp.allclose(pb, rpb, atol=1e-5, rtol=1e-5)
    assert jnp.allclose(vb, rvb, atol=1e-5, rtol=1e-5)
    assert jnp.allclose(jnp.sum(pb, axis=-1), 1.0, atol=1e-5)

    print("KERNEL_OK")
</pallas_src>

<mosaic_0001>
module attributes {stable_mosaic.version = 11 : i64} {
  func.func @ppo_kernel(%arg0: memref<8x16xf32, #tpu.memory_space<vmem>>, %arg1: memref<16x64xf32, #tpu.memory_space<vmem>>, %arg2: memref<64x64xf32, #tpu.memory_space<vmem>>, %arg3: memref<64x128xf32, #tpu.memory_space<vmem>>, %arg4: memref<2x64xf32, #tpu.memory_space<vmem>>, %arg5: memref<1x128xf32, #tpu.memory_space<vmem>>, %arg6: memref<8x128xf32, #tpu.memory_space<vmem>>) attributes {dimension_semantics = [], scalar_prefetch = 0 : i64, scratch_operands = 0 : i64, tpu.core_type = #tpu.core_type<tc>} {
    %c0 = arith.constant 0 : index
    %c0_0 = arith.constant 0 : index
    %0 = vector.load %arg0[%c0, %c0_0] : memref<8x16xf32, #tpu.memory_space<vmem>>, vector<8x16xf32>
    %c0_1 = arith.constant 0 : index
    %c0_2 = arith.constant 0 : index
    %1 = vector.load %arg4[%c0_1, %c0_2] : memref<2x64xf32, #tpu.memory_space<vmem>>, vector<2x64xf32>
    %2 = vector.extract_strided_slice %1 {offsets = [0, 0], sizes = [1, 64], strides = [1, 1]} : vector<2x64xf32> to vector<1x64xf32>
    %3 = vector.extract_strided_slice %1 {offsets = [1, 0], sizes = [1, 64], strides = [1, 1]} : vector<2x64xf32> to vector<1x64xf32>
    %c0_3 = arith.constant 0 : index
    %c0_4 = arith.constant 0 : index
    %4 = vector.load %arg1[%c0_3, %c0_4] : memref<16x64xf32, #tpu.memory_space<vmem>>, vector<16x64xf32>
    %cst = arith.constant dense<0.000000e+00> : vector<8x64xf32>
    %5 = tpu.matmul %0, %4, %cst {dimension_numbers = #tpu.dot_dimension_numbers<[1], [0], [0], [1], [0, 0, 1, 1], [], []>} : vector<8x16xf32>, vector<16x64xf32>, vector<8x64xf32> -> vector<8x64xf32>
    %6 = vector.broadcast %2 : vector<1x64xf32> to vector<8x64xf32>
    %7 = arith.addf %5, %6 : vector<8x64xf32>
    %cst_5 = arith.constant 0.000000e+00 : f32
    %8 = vector.broadcast %cst_5 : f32 to vector<8x64xf32>
    %9 = arith.maximumf %7, %8 : vector<8x64xf32>
    %c0_6 = arith.constant 0 : index
    %c0_7 = arith.constant 0 : index
    %10 = vector.load %arg2[%c0_6, %c0_7] : memref<64x64xf32, #tpu.memory_space<vmem>>, vector<64x64xf32>
    %cst_8 = arith.constant dense<0.000000e+00> : vector<8x64xf32>
    %11 = tpu.matmul %9, %10, %cst_8 {dimension_numbers = #tpu.dot_dimension_numbers<[1], [0], [0], [1], [0, 0, 1, 1], [], []>} : vector<8x64xf32>, vector<64x64xf32>, vector<8x64xf32> -> vector<8x64xf32>
    %12 = vector.broadcast %3 : vector<1x64xf32> to vector<8x64xf32>
    %13 = arith.addf %11, %12 : vector<8x64xf32>
    %cst_9 = arith.constant 0.000000e+00 : f32
    %14 = vector.broadcast %cst_9 : f32 to vector<8x64xf32>
    %15 = arith.maximumf %13, %14 : vector<8x64xf32>
    %c0_10 = arith.constant 0 : index
    %c0_11 = arith.constant 0 : index
    %16 = vector.load %arg3[%c0_10, %c0_11] : memref<64x128xf32, #tpu.memory_space<vmem>>, vector<64x128xf32>
    %cst_12 = arith.constant dense<0.000000e+00> : vector<8x128xf32>
    %17 = tpu.matmul %15, %16, %cst_12 {dimension_numbers = #tpu.dot_dimension_numbers<[1], [0], [0], [1], [0, 0, 1, 1], [], []>} : vector<8x64xf32>, vector<64x128xf32>, vector<8x128xf32> -> vector<8x128xf32>
    %c0_13 = arith.constant 0 : index
    %c0_14 = arith.constant 0 : index
    %18 = vector.load %arg5[%c0_13, %c0_14] : memref<1x128xf32, #tpu.memory_space<vmem>>, vector<1x128xf32>
    %19 = vector.broadcast %18 : vector<1x128xf32> to vector<8x128xf32>
    %20 = arith.addf %17, %19 : vector<8x128xf32>
    %21 = tpu.iota {dimensions = array<i32: 1>} : vector<8x128xi32>
    %c8_i32 = arith.constant 8 : i32
    %22 = vector.broadcast %c8_i32 : i32 to vector<8x128xi32>
    %23 = arith.cmpi slt, %21, %22 : vector<8x128xi32>
    %cst_15 = arith.constant 0xFF800000 : f32
    %24 = vector.broadcast %cst_15 : f32 to vector<8x128xf32>
    %25 = arith.select %23, %20, %24 : vector<8x128xi1>, vector<8x128xf32>
    %cst_16 = arith.constant dense<0xFF800000> : vector<8xf32>
    %26 = vector.multi_reduction <maximumf>, %25, %cst_16 [1] : vector<8x128xf32> to vector<8xf32>
    %27 = vector.shape_cast %26 : vector<8xf32> to vector<8x1xf32>
    %28 = vector.broadcast %27 : vector<8x1xf32> to vector<8x128xf32>
    %29 = arith.subf %20, %28 : vector<8x128xf32>
    %30 = math.exp %29 : vector<8x128xf32>
    %cst_17 = arith.constant 0.000000e+00 : f32
    %31 = vector.broadcast %cst_17 : f32 to vector<8x128xf32>
    %32 = arith.select %23, %30, %31 : vector<8x128xi1>, vector<8x128xf32>
    %cst_18 = arith.constant dense<0.000000e+00> : vector<8xf32>
    %33 = vector.multi_reduction <add>, %32, %cst_18 [1] : vector<8x128xf32> to vector<8xf32>
    %34 = vector.shape_cast %33 : vector<8xf32> to vector<8x1xf32>
    %35 = vector.broadcast %34 : vector<8x1xf32> to vector<8x128xf32>
    %36 = arith.divf %32, %35 : vector<8x128xf32>
    %37 = arith.select %23, %36, %20 : vector<8x128xi1>, vector<8x128xf32>
    %c0_19 = arith.constant 0 : index
    %c0_20 = arith.constant 0 : index
    %38 = vector.load %arg6[%c0_19, %c0_20] : memref<8x128xf32, #tpu.memory_space<vmem>>, vector<8x128xf32>
    tpu.vector_store %arg6[%c0_19, %c0_20], %37 {strides = array<i32>} : memref<8x128xf32, #tpu.memory_space<vmem>>, vector<8x128xf32>,
    return
  }
}

</mosaic_0001>

<llo_original>
// kernel: ppo_forward.1
$region0: #{ppo_forward.1}
  #allocation0 [shape = 'u32[]', space=smem, size = 0x4, offset = 0x4, fixed_abs, tag = 'smem constant byte address 0x4 - core index']
  #allocation1 [shape = 'u32[144,128]{1,0:T(1,128)}', space=vmem, size = 0x12000, scoped, tag = 'internal scratch']
  %s0 = inlined_call_operand.hbm [shape: f32[8,16], index: 0, kind: input, shape index: {}]
  %s1 = inlined_call_operand.hbm [shape: f32[16,64], index: 1, kind: input, shape index: {}]
  %s2 = inlined_call_operand.hbm [shape: f32[64,64], index: 2, kind: input, shape index: {}]
  %s3 = inlined_call_operand.hbm [shape: f32[64,128], index: 3, kind: input, shape index: {}]
  %s4 = inlined_call_operand.vmem [shape: f32[2,64], index: 4, kind: input, shape index: {}]
  %s5 = inlined_call_operand.vmem [shape: f32[1,128], index: 5, kind: input, shape index: {}]
  %s6 = inlined_call_operand.vmem [shape: f32[8,128], index: 6, kind: output, shape index: {}]
  %s7 = sld [smem:[#allocation0]]
  $region50: #{ppo_forward.1} parent=0
    _
  %s9 = ssub.s32 1, %s7
  %s10 = scalar_select 0, %s9, %s7
  $region1: #{ppo_forward.1} parent=0
    #allocation2 [shape = 'u8[4096]{0}', space=vmem, size = 0x1000, scoped, tag = 'input window, operand 0, single buffered']
    #allocation3 [shape = 's32[1]{0}', space=sflag, size = 0x4, scoped, tag = 'scoped memory for ppo_forward.1']
    #allocation4 [shape = 'u8[8192]{0}', space=vmem, size = 0x2000, scoped, tag = 'input window, operand 1, single buffered']
    #allocation5 [shape = 's32[1]{0}', space=sflag, size = 0x4, scoped, tag = 'scoped memory for ppo_forward.1']
    #allocation6 [shape = 'u8[32768]{0}', space=vmem, size = 0x8000, scoped, tag = 'input window, operand 2, single buffered']
    #allocation7 [shape = 'u8[32768]{0}', space=vmem, size = 0x8000, scoped, tag = 'input window, operand 3, single buffered']
    #allocation8 [shape = 's32[1]{0}', space=sflag, size = 0x4, scoped, tag = 'scoped memory for ppo_forward.1']
    %11 = vsyncpa [#allocation3], 0
    %12 = vsyncpa [#allocation5], 0
    %13 = vsyncpa [#allocation8], 0
    // Predicated region
    $region2: #{ppo_forward.1} parent=1 // pred_check
      _
    $region3: #{ppo_forward.1} parent=1 // pred_check_branch
      %15 = sbr.rel (0) target = $region5
    $region4: #{ppo_forward.1} parent=1 // pred_region
      %s17 = ssub.s32 128, 128
      %18 = vsyncadd [#allocation3], %s17
      %s20 = sshll.u32 [#allocation2], 4
      %s21 = int_to_ptr.vmem [resolvable:$true] %s20
      %23 = dma.hbm_to_vmem [thread:$0]  %s0, 128, %s21, [#allocation3]
    $region5: #{ppo_forward.1} parent=1 // pred_fallthru
      _
    // Predicated region
    $region6: #{ppo_forward.1} parent=1 // pred_check
      _
    $region7: #{ppo_forward.1} parent=1 // pred_check_branch
      %25 = sbr.rel (0) target = $region9
    $region8: #{ppo_forward.1} parent=1 // pred_region
      %s27 = ssub.s32 256, 256
      %28 = vsyncadd [#allocation5], %s27
      %s29 = sshll.u32 [#allocation4], 4
      %s30 = int_to_ptr.vmem [resolvable:$true] %s29
      %35 = dma.hbm_to_vmem [thread:$0]  %s1, 256, %s30, [#allocation5], 128, 128, 8
    $region9: #{ppo_forward.1} parent=1 // pred_fallthru
      _
    // Predicated region
    $region10: #{ppo_forward.1} parent=1 // pred_check
      _
    $region11: #{ppo_forward.1} parent=1 // pred_check_branch
      %37 = sbr.rel (0) target = $region13
    $region12: #{ppo_forward.1} parent=1 // pred_region
      %s39 = ssub.s32 1024, 1024
      %40 = vsyncadd [#allocation5], %s39
      %s41 = sshll.u32 [#allocation6], 4
      %s42 = int_to_ptr.vmem [resolvable:$true] %s41
      %47 = dma.hbm_to_vmem [thread:$0]  %s2, 1024, %s42, [#allocation5], 128, 128, 8
    $region13: #{ppo_forward.1} parent=1 // pred_fallthru
      _
    // Predicated region
    $region14: #{ppo_forward.1} parent=1 // pred_check
      _
    $region15: #{ppo_forward.1} parent=1 // pred_check_branch
      %49 = sbr.rel (0) target = $region17
    $region16: #{ppo_forward.1} parent=1 // pred_region
      %s51 = ssub.s32 1024, 1024
      %52 = vsyncadd [#allocation8], %s51
      %s53 = sshll.u32 [#allocation7], 4
      %s54 = int_to_ptr.vmem [resolvable:$true] %s53
      %59 = dma.hbm_to_vmem [thread:$0]  %s3, 1024, %s54, [#allocation8], 128, 128, 8
    $region17: #{ppo_forward.1} parent=1 // pred_fallthru
      _
    // Predicated region
    $region18: #{ppo_forward.1} parent=1 // pred_check
      _
    $region19: #{ppo_forward.1} parent=1 // pred_check_branch
      %61 = sbr.rel (0) target = $region21
    $region20: #{ppo_forward.1} parent=1 // pred_region
      _
    $region21: #{ppo_forward.1} parent=1 // pred_fallthru
      _
    // Predicated region
    $region22: #{ppo_forward.1} parent=1 // pred_check
      _
    $region23: #{ppo_forward.1} parent=1 // pred_check_branch
      %63 = sbr.rel (0) target = $region25
    $region24: #{ppo_forward.1} parent=1 // pred_region
      _
    $region25: #{ppo_forward.1} parent=1 // pred_fallthru
      _
    // Predicated region
    $region26: #{ppo_forward.1} parent=1 // pred_check
      _
    $region27: #{ppo_forward.1} parent=1 // pred_check_branch
      %65 = sbr.rel (0) target = $region29
    $region28: #{ppo_forward.1} parent=1 // pred_region
      %66 = dma.done [#allocation3], 128
    $region29: #{ppo_forward.1} parent=1 // pred_fallthru
      _
    // Predicated region
    $region30: #{ppo_forward.1} parent=1 // pred_check
      _
    $region31: #{ppo_forward.1} parent=1 // pred_check_branch
      %68 = sbr.rel (0) target = $region33
    $region32: #{ppo_forward.1} parent=1 // pred_region
      %69 = dma.done [#allocation5], 256
    $region33: #{ppo_forward.1} parent=1 // pred_fallthru
      _
    // Predicated region
    $region34: #{ppo_forward.1} parent=1 // pred_check
      _
    $region35: #{ppo_forward.1} parent=1 // pred_check_branch
      %71 = sbr.rel (0) target = $region37
    $region36: #{ppo_forward.1} parent=1 // pred_region
      %72 = dma.done [#allocation5], 1024
    $region37: #{ppo_forward.1} parent=1 // pred_fallthru
      _
    // Predicated region
    $region38: #{ppo_forward.1} parent=1 // pred_check
      _
    $region39: #{ppo_forward.1} parent=1 // pred_check_branch
      %74 = sbr.rel (0) target = $region41
    $region40: #{ppo_forward.1} parent=1 // pred_region
      %75 = dma.done [#allocation8], 1024
    $region41: #{ppo_forward.1} parent=1 // pred_fallthru
      _
    %v76 = vld [vmem:[#allocation2] sm:$0xff]
    %v77 = vld [vmem:[%s4] sm:$0x3]
    %v78 = vld [vmem:[#allocation4] sm:$0xff]
    %v79 = vld [vmem:[#allocation4 + $0x8] sm:$0xff]
    %v80 = vlaneseq
    %v81 = vshrl.u32 %v80, 7
    %v82 = vsub.s32 0, %v81
    %v83 = vrot.slane %v77, %v82
    %vm84 = vcmask 130048
    %v86 = vsel %vm84, %v76, 0
    %88 = vmatprep.subr.mxu0 0.0
    %89 = vmatpush1.msra.mxu0 0.0
    %90 = vmatprep.subr.mxu0 0.0
    %91 = vmatpush1.msra.mxu0 0.0
    %92 = vmatprep.subr.mxu0 0.0
    %93 = vmatpush1.msra.mxu0 0.0
    %94 = vmatprep.subr.mxu0 0.0
    %95 = vmatpush1.msra.mxu0 0.0
    %96 = vmatprep.subr.mxu0 0.0
    %97 = vmatpush1.msra.mxu0 0.0
    %98 = vmatprep.subr.mxu0 0.0
    %99 = vmatpush1.msra.mxu0 0.0
    %100 = vmatprep.subr.mxu0 0.0
    %101 = vmatpush1.msra.mxu0 0.0
    %102 = vmatprep.subr.mxu0 0.0
    %103 = vmatpush1.msra.mxu0 0.0
    %104 = vmatprep.subr.mxu0 0.0
    %105 = vmatpush1.msra.mxu0 0.0
    %106 = vmatprep.subr.mxu0 0.0
    %107 = vmatpush1.msra.mxu0 0.0
    %108 = vmatprep.subr.mxu0 0.0
    %109 = vmatpush1.msra.mxu0 0.0
    %110 = vmatprep.subr.mxu0 0.0
    %111 = vmatpush1.msra.mxu0 0.0
    %112 = vmatprep.subr.mxu0 0.0
    %113 = vmatpush1.msra.mxu0 0.0
    %114 = vmatprep.subr.mxu0 0.0
    %115 = vmatpush1.msra.mxu0 0.0
    %116 = vmatprep.subr.mxu0 0.0
    %117 = vmatpush1.msra.mxu0 %v79
    %118 = vmatprep.subr.mxu0 0.0
    %119 = vmatpush1.msra.mxu0 %v78
    %120 = vmatprep.subr.mxu0 0.0
    %121 = vmatpush2.msra.mxu0 0.0
    %122 = vmatprep.subr.mxu0 0.0
    %123 = vmatpush2.msra.mxu0 0.0
    %124 = vmatprep.subr.mxu0 0.0
    %125 = vmatpush2.msra.mxu0 0.0
    %126 = vmatprep.subr.mxu0 0.0
    %127 = vmatpush2.msra.mxu0 0.0
    %128 = vmatprep.subr.mxu0 0.0
    %129 = vmatpush2.msra.mxu0 0.0
    %130 = vmatprep.subr.mxu0 0.0
    %131 = vmatpush2.msra.mxu0 0.0
    %132 = vmatprep.subr.mxu0 0.0
    %133 = vmatpush2.msra.mxu0 0.0
    %134 = vmatprep.subr.mxu0 0.0
    %135 = vmatpush2.msra.mxu0 0.0
    %136 = vmatprep.subr.mxu0 0.0
    %137 = vmatpush2.msra.mxu0 0.0
    %138 = vmatprep.subr.mxu0 0.0
    %139 = vmatpush2.msra.mxu0 0.0
    %140 = vmatprep.subr.mxu0 0.0
    %141 = vmatpush2.msra.mxu0 0.0
    %142 = vmatprep.subr.mxu0 0.0
    %143 = vmatpush2.msra.mxu0 0.0
    %144 = vmatprep.subr.mxu0 0.0
    %145 = vmatpush2.msra.mxu0 0.0
    %146 = vmatprep.subr.mxu0 0.0
    %147 = vmatpush2.msra.mxu0 0.0
    %148 = vmatprep.subr.mxu0 0.0
    %149 = vmatpush2.msra.mxu0 0.0
    %150 = vmatprep.subr.mxu0 0.0
    %151 = vmatpush2.msra.mxu0 0.0
    %152 = vmatprep.mubr.f32.mxu0 0.0
    %153 = vmatmul.mubr.f32.gmra.mxu0 %v86
    %v154 = vpop.f32.mrf.mxu0
    %v155 = vadd.f32 %v83, %v154
    %v156 = vpop.f32.mrf.mxu0
    %157 = vdwg.mxu0
    %v158 = vmax.f32 %v155, 0.0
    %v159 = vld [vmem:[#allocation6] sm:$0xff]
    %v160 = vld [vmem:[#allocation6 + $0x8] sm:$0xff]
    %v161 = vld [vmem:[#allocation6 + $0x10] sm:$0xff]
    %v162 = vld [vmem:[#allocation6 + $0x18] sm:$0xff]
    %v163 = vld [vmem:[#allocation6 + $0x20] sm:$0xff]
    %v164 = vld [vmem:[#allocation6 + $0x28] sm:$0xff]
    %v165 = vld [vmem:[#allocation6 + $0x30] sm:$0xff]
    %v166 = vld [vmem:[#allocation6 + $0x38] sm:$0xff]
    %v167 = vlaneseq
    %v168 = vshrl.u32 %v167, 7
    %v169 = vsub.s32 1, %v168
    %v170 = vrot.slane %v77, %v169
    %vm171 = vcmask 523264
    %v173 = vsel %vm171, %v158, 0
    %175 = vmatprep.subr.mxu0 0.0
    %176 = vmatpush1.msra.mxu0 0.0
    %177 = vmatprep.subr.mxu0 0.0
    %178 = vmatpush1.msra.mxu0 0.0
    %179 = vmatprep.subr.mxu0 0.0
    %180 = vmatpush1.msra.mxu0 0.0
    %181 = vmatprep.subr.mxu0 0.0
    %182 = vmatpush1.msra.mxu0 0.0
    %183 = vmatprep.subr.mxu0 0.0
    %184 = vmatpush1.msra.mxu0 0.0
    %185 = vmatprep.subr.mxu0 0.0
    %186 = vmatpush1.msra.mxu0 0.0
    %187 = vmatprep.subr.mxu0 0.0
    %188 = vmatpush1.msra.mxu0 0.0
    %189 = vmatprep.subr.mxu0 0.0
    %190 = vmatpush1.msra.mxu0 0.0
    %191 = vmatprep.subr.mxu0 0.0
    %192 = vmatpush1.msra.mxu0 %v166
    %193 = vmatprep.subr.mxu0 0.0
    %194 = vmatpush1.msra.mxu0 %v165
    %195 = vmatprep.subr.mxu0 0.0
    %196 = vmatpush1.msra.mxu0 %v164
    %197 = vmatprep.subr.mxu0 0.0
    %198 = vmatpush1.msra.mxu0 %v163
    %199 = vmatprep.subr.mxu0 0.0
    %200 = vmatpush1.msra.mxu0 %v162
    %201 = vmatprep.subr.mxu0 0.0
    %202 = vmatpush1.msra.mxu0 %v161
    %203 = vmatprep.subr.mxu0 0.0
    %204 = vmatpush1.msra.mxu0 %v160
    %205 = vmatprep.subr.mxu0 0.0
    %206 = vmatpush1.msra.mxu0 %v159
    %207 = vmatprep.subr.mxu0 0.0
    %208 = vmatpush2.msra.mxu0 0.0
    %209 = vmatprep.subr.mxu0 0.0
    %210 = vmatpush2.msra.mxu0 0.0
    %211 = vmatprep.subr.mxu0 0.0
    %212 = vmatpush2.msra.mxu0 0.0
    %213 = vmatprep.subr.mxu0 0.0
    %214 = vmatpush2.msra.mxu0 0.0
    %215 = vmatprep.subr.mxu0 0.0
    %216 = vmatpush2.msra.mxu0 0.0
    %217 = vmatprep.subr.mxu0 0.0
    %218 = vmatpush2.msra.mxu0 0.0
    %219 = vmatprep.subr.mxu0 0.0
    %220 = vmatpush2.msra.mxu0 0.0
    %221 = vmatprep.subr.mxu0 0.0
    %222 = vmatpush2.msra.mxu0 0.0
    %223 = vmatprep.subr.mxu0 0.0
    %224 = vmatpush2.msra.mxu0 0.0
    %225 = vmatprep.subr.mxu0 0.0
    %226 = vmatpush2.msra.mxu0 0.0
    %227 = vmatprep.subr.mxu0 0.0
    %228 = vmatpush2.msra.mxu0 0.0
    %229 = vmatprep.subr.mxu0 0.0
    %230 = vmatpush2.msra.mxu0 0.0
    %231 = vmatprep.subr.mxu0 0.0
    %232 = vmatpush2.msra.mxu0 0.0
    %233 = vmatprep.subr.mxu0 0.0
    %234 = vmatpush2.msra.mxu0 0.0
    %235 = vmatprep.subr.mxu0 0.0
    %236 = vmatpush2.msra.mxu0 0.0
    %237 = vmatprep.subr.mxu0 0.0
    %238 = vmatpush2.msra.mxu0 0.0
    %239 = vmatprep.mubr.f32.mxu0 0.0
    %240 = vmatmul.mubr.f32.gmra.mxu0 %v173
    %v241 = vpop.f32.mrf.mxu0
    %v242 = vadd.f32 %v170, %v241
    %v243 = vpop.f32.mrf.mxu0
    %244 = vdwg.mxu0
    %v245 = vmax.f32 %v242, 0.0
    %v246 = vld [vmem:[#allocation7] sm:$0xff]
    %v247 = vld [vmem:[#allocation7 + $0x8] sm:$0xff]
    %v248 = vld [vmem:[#allocation7 + $0x10] sm:$0xff]
    %v249 = vld [vmem:[#allocation7 + $0x18] sm:$0xff]
    %v250 = vld [vmem:[#allocation7 + $0x20] sm:$0xff]
    %v251 = vld [vmem:[#allocation7 + $0x28] sm:$0xff]
    %v252 = vld [vmem:[#allocation7 + $0x30] sm:$0xff]
    %v253 = vld [vmem:[#allocation7 + $0x38] sm:$0xff]
    %v254 = vld [vmem:[%s5] sm:$0x1]
    %v256 = vlaneseq
    %v257 = vshrl.u32 %v256, 7
    %v258 = vsub.s32 0, %v257
    %v259 = vrot.slane %v254, %v258
    %v262 = vsel %vm171, %v245, 0
    %264 = vmatprep.subr.mxu0 0.0
    %265 = vmatpush1.msra.mxu0 0.0
    %266 = vmatprep.subr.mxu0 0.0
    %267 = vmatpush1.msra.mxu0 0.0
    %268 = vmatprep.subr.mxu0 0.0
    %269 = vmatpush1.msra.mxu0 0.0
    %270 = vmatprep.subr.mxu0 0.0
    %271 = vmatpush1.msra.mxu0 0.0
    %272 = vmatprep.subr.mxu0 0.0
    %273 = vmatpush1.msra.mxu0 0.0
    %274 = vmatprep.subr.mxu0 0.0
    %275 = vmatpush1.msra.mxu0 0.0
    %276 = vmatprep.subr.mxu0 0.0
    %277 = vmatpush1.msra.mxu0 0.0
    %278 = vmatprep.subr.mxu0 0.0
    %279 = vmatpush1.msra.mxu0 0.0
    %280 = vmatprep.subr.mxu0 0.0
    %281 = vmatpush1.msra.mxu0 %v253
    %282 = vmatprep.subr.mxu0 0.0
    %283 = vmatpush1.msra.mxu0 %v252
    %284 = vmatprep.subr.mxu0 0.0
    %285 = vmatpush1.msra.mxu0 %v251
    %286 = vmatprep.subr.mxu0 0.0
    %287 = vmatpush1.msra.mxu0 %v250
    %288 = vmatprep.subr.mxu0 0.0
    %289 = vmatpush1.msra.mxu0 %v249
    %290 = vmatprep.subr.mxu0 0.0
    %291 = vmatpush1.msra.mxu0 %v248
    %292 = vmatprep.subr.mxu0 0.0
    %293 = vmatpush1.msra.mxu0 %v247
    %294 = vmatprep.subr.mxu0 0.0
    %295 = vmatpush1.msra.mxu0 %v246
    %296 = vmatprep.subr.mxu0 0.0
    %297 = vmatpush2.msra.mxu0 0.0
    %298 = vmatprep.subr.mxu0 0.0
    %299 = vmatpush2.msra.mxu0 0.0
    %300 = vmatprep.subr.mxu0 0.0
    %301 = vmatpush2.msra.mxu0 0.0
    %302 = vmatprep.subr.mxu0 0.0
    %303 = vmatpush2.msra.mxu0 0.0
    %304 = vmatprep.subr.mxu0 0.0
    %305 = vmatpush2.msra.mxu0 0.0
    %306 = vmatprep.subr.mxu0 0.0
    %307 = vmatpush2.msra.mxu0 0.0
    %308 = vmatprep.subr.mxu0 0.0
    %309 = vmatpush2.msra.mxu0 0.0
    %310 = vmatprep.subr.mxu0 0.0
    %311 = vmatpush2.msra.mxu0 0.0
    %312 = vmatprep.subr.mxu0 0.0
    %313 = vmatpush2.msra.mxu0 0.0
    %314 = vmatprep.subr.mxu0 0.0
    %315 = vmatpush2.msra.mxu0 0.0
    %316 = vmatprep.subr.mxu0 0.0
    %317 = vmatpush2.msra.mxu0 0.0
    %318 = vmatprep.subr.mxu0 0.0
    %319 = vmatpush2.msra.mxu0 0.0
    %320 = vmatprep.subr.mxu0 0.0
    %321 = vmatpush2.msra.mxu0 0.0
    %322 = vmatprep.subr.mxu0 0.0
    %323 = vmatpush2.msra.mxu0 0.0
    %324 = vmatprep.subr.mxu0 0.0
    %325 = vmatpush2.msra.mxu0 0.0
    %326 = vmatprep.subr.mxu0 0.0
    %327 = vmatpush2.msra.mxu0 0.0
    %328 = vmatprep.mubr.f32.mxu0 0.0
    %329 = vmatmul.mubr.f32.gmra.mxu0 %v262
    %v330 = vpop.f32.mrf.mxu0
    %v331 = vadd.f32 %v259, %v330
    %v332 = vpop.f32.mrf.mxu0
    %333 = vdwg.mxu0
    %v334 = vlaneseq
    %v335 = vand.u32 %v334, 127
    %vm336 = vcmp.lt.s32.totalorder %v335, 8
    %v337 = vsel %vm336, %v331, -inf
    %338 = vmax.xlane.f32.xlu0 %v337
    %v339 = vpop.xlane.xlu0 %338
    %v340 = vsub.f32 %v331, %v339
    %v341 = vmul.f32 %v340, 1.442695
    %v342 = vpow.pop %v341
    %v343 = vsel %vm336, %v342, 0.0
    %344 = vadd.xlane.f32.xlu0 %v343
    %v345 = vpop.xlane.xlu0 %344
    %v346 = vrcp.pop %v345
    %v347 = vmul.f32 %v343, %v346
    %v348 = vsel %vm336, %v347, %v331
    %349 = vst [vmem:[%s6] sm:$0xff] %v348
    // Predicated region
    $region42: #{ppo_forward.1} parent=1 // pred_check
      _
    $region43: #{ppo_forward.1} parent=1 // pred_check_branch
      %351 = sbr.rel (0) target = $region45
    $region44: #{ppo_forward.1} parent=1 // pred_region
      _
    $region45: #{ppo_forward.1} parent=1 // pred_fallthru
      _
    // Predicated region
    $region46: #{ppo_forward.1} parent=1 // pred_check
      _
    $region47: #{ppo_forward.1} parent=1 // pred_check_branch
      %353 = sbr.rel (0) target = $region49
    $region48: #{ppo_forward.1} parent=1 // pred_region
      _
    $region49: #{ppo_forward.1} parent=1 // pred_fallthru
      _
    %354 = vsyncpa [#allocation3], 1
    %355 = vsyncpa [#allocation5], 1
    %356 = vsyncpa [#allocation8], 1

</llo_original>
